<compile_context>
chip_gen: v7x
topology: tpu7x:2x2x1
jax: 0.10.0
libtpu: 0.0.40
codegen_flags: <defaults>
</compile_context>

<pallas_src>
import math

import jax
import jax.numpy as jnp
from jax.experimental import pallas as pl
from jax.experimental.pallas import tpu as pltpu


def _quad_linear_fused_kernel(x_ref, w_ref, b_ref, o_ref):
    # x_ref: (B, in_dim)            bf16
    # w_ref: (in_dim, n_total_pad)  bf16, all 4 heads' weights concatenated (zero-padded)
    # b_ref: (1, n_total_pad)       f32,  all 4 heads' biases concatenated (zero-padded)
    # o_ref: (B, n_total_pad)       f32,  lane-dense fused output (128-lane multiple)
    y = jnp.dot(x_ref[...], w_ref[...], preferred_element_type=jnp.float32)
    o_ref[...] = (y + b_ref[...]).astype(o_ref.dtype)


def quad_classifier_forward_fused(x, w_cat, b_cat):
    """Fused forward: returns the lane-dense (B, n_heads*out_dim_pad) f32 block.

    Prefer consuming this directly (heads live at column offsets h*out_dim_pad)
    to avoid lane-sparse per-head slice copies.
    """
    B, in_dim = x.shape
    in_dim_w, n_total = w_cat.shape
    assert in_dim_w == in_dim
    assert n_total % 128 == 0, "pack_params must pad the fused N dim to 128 lanes"

    # Match activation dtype to the packed (bf16) weights: halves the x DMA and
    # feeds the native bf16 MXU path; accumulation stays f32 inside the kernel.
    x = x.astype(w_cat.dtype)

    cost = pl.CostEstimate(
        flops=2 * B * in_dim * n_total,
        transcendentals=0,
        bytes_accessed=(
            B * in_dim * x.dtype.itemsize
            + in_dim * n_total * w_cat.dtype.itemsize
            + n_total * b_cat.dtype.itemsize
            + B * n_total * 4  # f32 output
        ),
    )

    out = pl.pallas_call(
        _quad_linear_fused_kernel,
        out_shape=jax.ShapeDtypeStruct((B, n_total), jnp.float32),
        # Single invocation (no grid): whole operands live in VMEM, one DMA each.
        in_specs=[
            pl.BlockSpec(memory_space=pltpu.MemorySpace.VMEM),
            pl.BlockSpec(memory_space=pltpu.MemorySpace.VMEM),
            pl.BlockSpec(memory_space=pltpu.MemorySpace.VMEM),
        ],
        out_specs=pl.BlockSpec(memory_space=pltpu.MemorySpace.VMEM),
        cost_estimate=cost,
    )(x, w_cat, b_cat)
    return out


def quad_classifier_forward(x, w_cat, b_cat, out_dim, n_heads=4):
    """PyTorch-parity forward: (logit1, logit2, logit3, logit4), each (B, out_dim).

    The per-head slices exclude the zero-padding columns.  If the caller can
    consume heads by index, use quad_classifier_forward_fused() instead and
    skip these lane-sparse slices entirely.
    """
    out = quad_classifier_forward_fused(x, w_cat, b_cat)
    out_dim_pad = out.shape[1] // n_heads
    assert out_dim <= out_dim_pad
    return tuple(
        out[:, h * out_dim_pad: h * out_dim_pad + out_dim] for h in range(n_heads)
    )


def init_params(key, in_dim, out_dim, n_heads=4):
    """Deterministic init mirroring nn.Linear: weight (out, in), bias (out), per head."""
    kw, kb = jax.random.split(key)
    bound = 1.0 / jnp.sqrt(jnp.float32(in_dim))
    # PyTorch layout: (heads, out_dim, in_dim) and (heads, out_dim)
    w_pt = jax.random.uniform(
        kw, (n_heads, out_dim, in_dim), jnp.float32, -bound, bound
    )
    b_pt = jax.random.uniform(kb, (n_heads, out_dim), jnp.float32, -bound, bound)
    return w_pt, b_pt


def pack_params(w_pt, b_pt, *, weight_dtype=jnp.bfloat16, lane_tile=128):
    """One-time (init-time) packing: PyTorch per-head params -> fused kernel params.

    Each head's out_dim is zero-padded so the fused N dim is a multiple of 128
    lanes (lane-dense, unmasked stores).  Weights are cast to bf16 for the MXU
    and halved DMA; biases stay f32 (added to the f32 accumulator).

    w_pt: (heads, out_dim, in_dim) -> w_cat: (in_dim, heads*out_dim_pad)  bf16
    b_pt: (heads, out_dim)         -> b_cat: (1, heads*out_dim_pad)       f32
    """
    n_heads, out_dim, in_dim = w_pt.shape
    per_head_align = lane_tile // math.gcd(lane_tile, n_heads)
    out_dim_pad = -(-out_dim // per_head_align) * per_head_align

    pad = out_dim_pad - out_dim
    # (heads, out, in) -> (in, heads, out) -> pad out axis -> (in, heads*out_pad)
    w = jnp.transpose(w_pt, (2, 0, 1))
    w = jnp.pad(w, ((0, 0), (0, 0), (0, pad)))
    w_cat = w.reshape(in_dim, n_heads * out_dim_pad).astype(weight_dtype)

    b = jnp.pad(b_pt, ((0, 0), (0, pad)))
    b_cat = b.reshape(1, n_heads * out_dim_pad).astype(jnp.float32)
    return w_cat, b_cat, out_dim_pad


if __name__ == "__main__":
    key = jax.random.PRNGKey(0)
    k_x, k_p = jax.random.split(key)

    # B = 16: multiple of the bf16 sublane tile so activation loads / MXU rows
    # are fully occupied.
    B, in_dim, out_dim, n_heads = 16, 32, 16, 4
    x = jax.random.normal(k_x, (B, in_dim), jnp.float32)

    w_pt, b_pt = init_params(k_p, in_dim, out_dim, n_heads)
    # Packing (transpose, pad-to-128-lanes, bf16 cast) happens once here,
    # not inside the per-call forward path.
    w_cat, b_cat, out_dim_pad = pack_params(w_pt, b_pt)
    assert w_cat.shape == (in_dim, n_heads * out_dim_pad)
    assert (n_heads * out_dim_pad) % 128 == 0

    logits = quad_classifier_forward(x, w_cat, b_cat, out_dim, n_heads)
    logits = jax.block_until_ready(logits)

    # Reference check against plain JAX f32 (same math as PyTorch x @ W.T + b).
    # Tolerance is loosened because operands go through bf16 on the MXU.
    ref = tuple(x @ w_pt[h].T + b_pt[h] for h in range(n_heads))
    for got, want in zip(logits, ref):
        assert got.shape == (B, out_dim)
        assert got.dtype == jnp.float32
        assert jnp.allclose(got, want, atol=5e-2, rtol=5e-2)

    # The fused lane-dense output (preferred downstream form) also checks out,
    # including zero padding columns.
    fused = jax.block_until_ready(quad_classifier_forward_fused(x, w_cat, b_cat))
    assert fused.shape == (B, n_heads * out_dim_pad)
    assert jnp.all(fused[:, out_dim:out_dim_pad] == 0.0)

    print("KERNEL_OK")
</pallas_src>

<mosaic_0001>
module attributes {stable_mosaic.version = 11 : i64} {
  func.func @_quad_linear_fused_kernel(%arg0: memref<16x32xbf16, #tpu.memory_space<vmem>>, %arg1: memref<32x128xbf16, #tpu.memory_space<vmem>>, %arg2: memref<1x128xf32, #tpu.memory_space<vmem>>, %arg3: memref<16x128xf32, #tpu.memory_space<vmem>>) attributes {dimension_semantics = [], scalar_prefetch = 0 : i64, scratch_operands = 0 : i64, tpu.core_type = #tpu.core_type<tc>} {
    %c0 = arith.constant 0 : index
    %c0_0 = arith.constant 0 : index
    %0 = vector.load %arg0[%c0, %c0_0] : memref<16x32xbf16, #tpu.memory_space<vmem>>, vector<16x32xbf16>
    %c0_1 = arith.constant 0 : index
    %c0_2 = arith.constant 0 : index
    %1 = vector.load %arg1[%c0_1, %c0_2] : memref<32x128xbf16, #tpu.memory_space<vmem>>, vector<32x128xbf16>
    %cst = arith.constant dense<0.000000e+00> : vector<16x128xf32>
    %2 = tpu.matmul %0, %1, %cst {dimension_numbers = #tpu.dot_dimension_numbers<[1], [0], [0], [1], [0, 0, 1, 1], [], []>} : vector<16x32xbf16>, vector<32x128xbf16>, vector<16x128xf32> -> vector<16x128xf32>
    %c0_3 = arith.constant 0 : index
    %c0_4 = arith.constant 0 : index
    %3 = vector.load %arg2[%c0_3, %c0_4] : memref<1x128xf32, #tpu.memory_space<vmem>>, vector<1x128xf32>
    %4 = vector.broadcast %3 : vector<1x128xf32> to vector<16x128xf32>
    %5 = arith.addf %2, %4 : vector<16x128xf32>
    %c0_5 = arith.constant 0 : index
    %c0_6 = arith.constant 0 : index
    %6 = vector.load %arg3[%c0_5, %c0_6] : memref<16x128xf32, #tpu.memory_space<vmem>>, vector<16x128xf32>
    tpu.vector_store %arg3[%c0_5, %c0_6], %5 {strides = array<i32>} : memref<16x128xf32, #tpu.memory_space<vmem>>, vector<16x128xf32>,
    return
  }
}

</mosaic_0001>

<llo_original>
// kernel: tpu_custom_call.1
$region0: #{tpu_custom_call.1}
  #allocation0 [shape = 'u32[]', space=smem, size = 0x4, offset = 0x4, fixed_abs, tag = 'smem constant byte address 0x4 - core index']
  #allocation1 [shape = 'u32[144,128]{1,0:T(1,128)}', space=vmem, size = 0x12000, scoped, tag = 'internal scratch']
  %s0 = inlined_call_operand.hbm [shape: bf16[16,32], index: 0, kind: input, shape index: {}]
  %s1 = inlined_call_operand.hbm [shape: bf16[32,128], index: 1, kind: input, shape index: {}]
  %s2 = inlined_call_operand.vmem [shape: f32[1,128], index: 2, kind: input, shape index: {}]
  %s3 = inlined_call_operand.hbm [shape: f32[16,128], index: 3, kind: output, shape index: {}]
  %s4 = sld [smem:[#allocation0]]
  $region30: #{tpu_custom_call.1} parent=0
    _
  %s6 = ssub.s32 1, %s4
  %s7 = scalar_select 0, %s6, %s4
  $region1: #{tpu_custom_call.1} parent=0
    #allocation2 [shape = 'u8[4096]{0}', space=vmem, size = 0x1000, scoped, tag = 'input window, operand 0, single buffered']
    #allocation3 [shape = 's32[1]{0}', space=sflag, size = 0x4, scoped, tag = 'scoped memory for tpu_custom_call.1']
    #allocation4 [shape = 's32[1]{0}', space=sflag, size = 0x4, scoped, tag = 'scoped memory for tpu_custom_call.1']
    #allocation5 [shape = 'u8[8192]{0}', space=vmem, size = 0x2000, scoped, tag = 'input window, operand 1, single buffered']
    #allocation6 [shape = 's32[1]{0}', space=sflag, size = 0x4, scoped, tag = 'scoped memory for tpu_custom_call.1']
    #allocation7 [shape = 'u8[8192]{0}', space=vmem, size = 0x2000, scoped, tag = 'output window, operand 0, single buffered']
    %8 = vsyncpa [#allocation3], 0
    %9 = vsyncpa [#allocation6], 0
    %10 = vsyncpa [#allocation4], 0
    // Predicated region
    $region2: #{tpu_custom_call.1} parent=1 // pred_check
      _
    $region3: #{tpu_custom_call.1} parent=1 // pred_check_branch
      %12 = sbr.rel (0) target = $region5
    $region4: #{tpu_custom_call.1} parent=1 // pred_region
      %s14 = ssub.s32 128, 128
      %15 = vsyncadd [#allocation3], %s14
      %s16 = sshll.u32 [#allocation2], 4
      %s17 = int_to_ptr.vmem [resolvable:$true] %s16
      %22 = dma.hbm_to_vmem [thread:$0]  %s0, 128, %s17, [#allocation3], 64, 64, 4
    $region5: #{tpu_custom_call.1} parent=1 // pred_fallthru
      _
    // Predicated region
    $region6: #{tpu_custom_call.1} parent=1 // pred_check
      _
    $region7: #{tpu_custom_call.1} parent=1 // pred_check_branch
      %24 = sbr.rel (0) target = $region9
    $region8: #{tpu_custom_call.1} parent=1 // pred_region
      %s26 = ssub.s32 256, 256
      %27 = vsyncadd [#allocation6], %s26
      %s28 = sshll.u32 [#allocation5], 4
      %s29 = int_to_ptr.vmem [resolvable:$true] %s28
      %34 = dma.hbm_to_vmem [thread:$0]  %s1, 256, %s29, [#allocation6], 64, 64, 4
    $region9: #{tpu_custom_call.1} parent=1 // pred_fallthru
      _
    // Predicated region
    $region10: #{tpu_custom_call.1} parent=1 // pred_check
      _
    $region11: #{tpu_custom_call.1} parent=1 // pred_check_branch
      %36 = sbr.rel (0) target = $region13
    $region12: #{tpu_custom_call.1} parent=1 // pred_region
      _
    $region13: #{tpu_custom_call.1} parent=1 // pred_fallthru
      _
    // Predicated region
    $region14: #{tpu_custom_call.1} parent=1 // pred_check
      _
    $region15: #{tpu_custom_call.1} parent=1 // pred_check_branch
      %38 = sbr.rel (0) target = $region17
    $region16: #{tpu_custom_call.1} parent=1 // pred_region
      %39 = dma.done [#allocation3], 128
    $region17: #{tpu_custom_call.1} parent=1 // pred_fallthru
      _
    // Predicated region
    $region18: #{tpu_custom_call.1} parent=1 // pred_check
      _
    $region19: #{tpu_custom_call.1} parent=1 // pred_check_branch
      %41 = sbr.rel (0) target = $region21
    $region20: #{tpu_custom_call.1} parent=1 // pred_region
      %42 = dma.done [#allocation6], 256
    $region21: #{tpu_custom_call.1} parent=1 // pred_fallthru
      _
    %v44 = vld [vmem:[#allocation2] sm:$0xf]
    %v45 = vld [vmem:[#allocation2 + $0x4] sm:$0xf]
    %v46 = vld [vmem:[#allocation5] sm:$0xf]
    %v47 = vld [vmem:[#allocation5 + $0x4] sm:$0xf]
    %v48 = vld [vmem:[#allocation5 + $0x8] sm:$0xf]
    %v49 = vld [vmem:[#allocation5 + $0xc] sm:$0xf]
    %v50 = vld [vmem:[%s2] sm:$0x1]
    %v52 = vlaneseq
    %v53 = vshrl.u32 %v52, 7
    %v54 = vsub.s32 0, %v53
    %v55 = vrot.slane %v50, %v54
    %v59 = vunpack.c.l.b16 %v44
    %v60 = vunpack.c.l.b16 %v45
    %v61 = vpack.c.b16 %v60, %v59
    %v66 = vunpack.c.l.b16 %v46
    %v67 = vunpack.c.l.b16 %v47
    %v68 = vunpack.c.l.b16 %v48
    %v69 = vunpack.c.l.b16 %v49
    %v70 = vpack.c.b16 %v67, %v66
    %v71 = vpack.c.b16 %v69, %v68
    %vm74 = vcmask 261120
    %v76 = vsel %vm74, %v61, 0
    %78 = vmatprep.subr.bf16.mxu0 0
    %79 = vmatpush1.bf16.msra.mxu0 %v70
    %80 = vmatprep.subr.bf16.mxu0 0
    %81 = vmatpush1.bf16.msra.mxu0 %v71
    %82 = vmatprep.subr.bf16.mxu0 0
    %83 = vmatpush1.bf16.msra.mxu0 0
    %84 = vmatprep.subr.bf16.mxu0 0
    %85 = vmatpush1.bf16.msra.mxu0 0
    %86 = vmatprep.subr.bf16.mxu0 0
    %87 = vmatpush1.bf16.msra.mxu0 0
    %88 = vmatprep.subr.bf16.mxu0 0
    %89 = vmatpush1.bf16.msra.mxu0 0
    %90 = vmatprep.subr.bf16.mxu0 0
    %91 = vmatpush1.bf16.msra.mxu0 0
    %92 = vmatprep.subr.bf16.mxu0 0
    %93 = vmatpush1.bf16.msra.mxu0 0
    %94 = vmatprep.subr.bf16.mxu0 0
    %95 = vmatpush1.bf16.msra.mxu0 0
    %96 = vmatprep.subr.bf16.mxu0 0
    %97 = vmatpush1.bf16.msra.mxu0 0
    %98 = vmatprep.subr.bf16.mxu0 0
    %99 = vmatpush1.bf16.msra.mxu0 0
    %100 = vmatprep.subr.bf16.mxu0 0
    %101 = vmatpush1.bf16.msra.mxu0 0
    %102 = vmatprep.subr.bf16.mxu0 0
    %103 = vmatpush1.bf16.msra.mxu0 0
    %104 = vmatprep.subr.bf16.mxu0 0
    %105 = vmatpush1.bf16.msra.mxu0 0
    %106 = vmatprep.subr.bf16.mxu0 0
    %107 = vmatpush1.bf16.msra.mxu0 0
    %108 = vmatprep.subr.bf16.mxu0 0
    %109 = vmatpush1.bf16.msra.mxu0 0
    %110 = vmatprep.mubr.bf16.mxu0 0
    %111 = vmatmul.mubr.bf16.gmra.mrb[0].mxu0 %v76
    %v112 = vpop.f32.mrb[0].mxu0
    %v113 = vadd.f32 %v55, %v112
    %v114 = vpop.f32.mrb[0].mxu0
    %v115 = vpop.f32.mrb[0].mxu0
    %v116 = vadd.f32 %v55, %v115
    %v117 = vpop.f32.mrb[0].mxu0
    %118 = vdwg.mxu0
    %119 = vst [vmem:[#allocation7] sm:$0xff] %v113
    %120 = vst [vmem:[#allocation7 + $0x8] sm:$0xff] %v116
    // Predicated region
    $region22: #{tpu_custom_call.1} parent=1 // pred_check
      _
    $region23: #{tpu_custom_call.1} parent=1 // pred_check_branch
      %122 = sbr.rel (0) target = $region25
    $region24: #{tpu_custom_call.1} parent=1 // pred_region
      %s124 = ssub.s32 256, 256
      %125 = vsyncadd [#allocation4], %s124
      %s126 = sshll.u32 [#allocation7], 4
      %s127 = int_to_ptr.vmem [resolvable:$true] %s126
      %132 = dma.vmem_to_hbm [thread:$0]  %s127, 256, %s3, [#allocation4], 128, 128, 8
    $region25: #{tpu_custom_call.1} parent=1 // pred_fallthru
      _
    // Predicated region
    $region26: #{tpu_custom_call.1} parent=1 // pred_check
      _
    $region27: #{tpu_custom_call.1} parent=1 // pred_check_branch
      %134 = sbr.rel (0) target = $region29
    $region28: #{tpu_custom_call.1} parent=1 // pred_region
      %135 = dma.done [#allocation4], 256
    $region29: #{tpu_custom_call.1} parent=1 // pred_fallthru
      _
    %136 = vsyncpa [#allocation3], 1
    %137 = vsyncpa [#allocation6], 1
    %138 = vsyncpa [#allocation4], 1

</llo_original>
